<compile_context>
chip_gen: v7x
topology: tpu7x:2x2x1
jax: 0.10.0
libtpu: 0.0.40
codegen_flags: <defaults>
</compile_context>

<pallas_src>
import functools

import numpy as np

import jax
import jax.numpy as jnp
from jax.experimental import pallas as pl
from jax.experimental.pallas import tpu as pltpu


def conv_relu_kernel(x_ref, w_ref, b_ref, o_ref, *, H, W):
    # x_ref: (NB, Cin, H*W)   activations, lane axis = flattened H*W
    # w_ref: (9, Cout, Cin)   3x3 kernel, tap t = kh*3 + kw
    # b_ref: (Cout, 1)        float32 bias
    # o_ref: (NB, Cout, H*W)  lane-dense output slab
    NB, Cin, HW = x_ref.shape
    Cout = o_ref.shape[1]

    bias = b_ref[...]  # (Cout, 1), f32

    # Border masks on the lane-dense H*W axis, computed once and shared by all
    # images / taps.  They implement the padding=1 zero halo in-register.
    lane = jax.lax.broadcasted_iota(jnp.int32, (Cin, HW), 1)
    if W & (W - 1) == 0:                       # power-of-two W: pure bit ops
        col = lane & (W - 1)
        row = lane >> (W.bit_length() - 1)
    else:                                      # general W: int VPU div/mod
        col = lane % W
        row = lane // W
    not_first_col = col > 0
    not_last_col = col < (W - 1)
    not_first_row = row > 0
    not_last_row = row < (H - 1)

    # Static tap table: (weight row, lane shift, border mask).
    taps = []
    for kh in range(3):
        for kw in range(3):
            dh, dw = kh - 1, kw - 1
            mask = None
            if dh < 0:
                mask = not_first_row
            elif dh > 0:
                mask = not_last_row
            if dw < 0:
                mask = not_first_col if mask is None else mask & not_first_col
            elif dw > 0:
                mask = not_last_col if mask is None else mask & not_last_col
            taps.append((kh * 3 + kw, dh * W + dw, mask))

    for nb in range(NB):                       # NB is capped small (<= 4)
        x_raw = x_ref[nb]                      # (Cin, HW), compute dtype
        x32 = x_raw.astype(jnp.float32)        # 32-bit path for lane rotates

        acc = None                             # f32 vreg accumulator
        for t, delta, mask in taps:
            if delta == 0 and mask is None:    # center tap: no roll, no mask
                tap = x_raw
            else:
                # out[i] = x[i + delta]  (masked where that read is OOB)
                shifted = x32 if delta == 0 else pltpu.roll(
                    x32, (-delta) % HW, axis=1)
                if mask is not None:
                    shifted = jnp.where(mask, shifted, 0.0)
                tap = shifted.astype(x_raw.dtype)
            contrib = jnp.dot(w_ref[t], tap,
                              preferred_element_type=jnp.float32)
            acc = contrib if acc is None else acc + contrib

        out = jnp.maximum(acc + bias, 0.0)     # bias + ReLU in f32
        o_ref[nb] = out.astype(o_ref.dtype)


def conv_block_forward(x_nchw, weight, bias, *, compute_dtype=None,
                       out_dtype=None, batch_block=None,
                       vmem_limit_bytes=32 * 1024 * 1024):
    """ConvBlock forward: 3x3 conv, stride 1, padding 1, then ReLU.

    x_nchw : (B, Cin, H, W)    float32
    weight : (3, 3, Cin, Cout) float32 (HWIO layout)
    bias   : (Cout,)           float32
    compute_dtype: None -> use x dtype (f32, PyTorch-matching numerics).
                   Pass jnp.bfloat16 explicitly for the half-bandwidth /
                   bf16-MXU fast path (looser numerics).
    returns: (B, Cout, H, W) in out_dtype (default: x dtype)
    """
    B, Cin, H, W = x_nchw.shape
    Cout = weight.shape[-1]
    HW = H * W

    compute_dtype = np.dtype(compute_dtype if compute_dtype is not None
                             else x_nchw.dtype)
    out_dtype = np.dtype(out_dtype if out_dtype is not None else x_nchw.dtype)

    # Free metadata reshape of contiguous NCHW; optional narrow cast so the
    # kernel DMAs / buffers compute_dtype activations (halves HBM->VMEM bytes
    # on the bf16 path).  No jnp.pad: the halo is handled by in-kernel masks.
    x_flat = x_nchw.reshape(B, Cin, HW)
    if x_flat.dtype != compute_dtype:
        x_flat = x_flat.astype(compute_dtype)

    # HWIO (3,3,Cin,Cout) -> (9, Cout, Cin), tap t = kh*3 + kw.  Pre-cast so
    # the resident weight block needs no per-step cast and half the DMA bytes.
    w_taps = jnp.transpose(weight.reshape(9, Cin, Cout), (0, 2, 1))
    if w_taps.dtype != compute_dtype:
        w_taps = w_taps.astype(compute_dtype)
    b2d = bias.reshape(Cout, 1).astype(jnp.float32)

    # ---- batch_block sizing from (8|16,128)-padded VMEM tile bytes --------
    def round_up(v, m):
        return (v + m - 1) // m * m

    lanes = round_up(HW, 128)
    sub_in = (8 * 4) // compute_dtype.itemsize    # 8 for f32, 16 for bf16
    sub_out = (8 * 4) // out_dtype.itemsize
    in_bytes = round_up(Cin, sub_in) * lanes * compute_dtype.itemsize
    out_bytes = round_up(Cout, sub_out) * lanes * out_dtype.itemsize
    per_img = 2 * (in_bytes + out_bytes)          # x2 for double buffering
    if batch_block is None:
        budget = 8 * 1024 * 1024                  # well inside vmem_limit
        batch_block = max(1, budget // per_img)
    # Cap: keep NB small (vreg live ranges / unrolled 9*NB taps) and force
    # >= 2 grid steps so both v7x TensorCores get work.
    batch_block = int(max(1, min(batch_block, 4, max(1, B // 2), B)))
    while B % batch_block:
        batch_block -= 1
    num_steps = B // batch_block

    kernel = functools.partial(conv_relu_kernel, H=H, W=W)

    out = pl.pallas_call(
        kernel,
        out_shape=jax.ShapeDtypeStruct((B, Cout, HW), out_dtype),
        grid_spec=pltpu.PrefetchScalarGridSpec(
            num_scalar_prefetch=0,
            grid=(num_steps,),
            in_specs=[
                pl.BlockSpec((batch_block, Cin, HW), lambda b: (b, 0, 0)),
                pl.BlockSpec((9, Cout, Cin), lambda b: (0, 0, 0)),
                pl.BlockSpec((Cout, 1), lambda b: (0, 0)),
            ],
            out_specs=pl.BlockSpec((batch_block, Cout, HW),
                                   lambda b: (b, 0, 0)),
        ),
        compiler_params=pltpu.CompilerParams(
            dimension_semantics=("parallel",),
            vmem_limit_bytes=vmem_limit_bytes),
    )(x_flat, w_taps, b2d)

    # Free metadata reshape back to NCHW.
    return out.reshape(B, Cout, H, W)


def _reference(x_nchw, weight, bias):
    """Pure-JAX reference (lax conv) for the correctness check."""
    out = jax.lax.conv_general_dilated(
        x_nchw, weight,
        window_strides=(1, 1),
        padding=((1, 1), (1, 1)),
        dimension_numbers=("NCHW", "HWIO", "NCHW"),
    )
    out = out + bias.reshape(1, -1, 1, 1)
    return jnp.maximum(out, 0.0)


if __name__ == "__main__":
    # Small shapes consistent with the module: B=2, Cin=4, Cout=8, H=W=16.
    B, Cin, Cout, H, W = 2, 4, 8, 16, 16

    key = jax.random.PRNGKey(0)
    kx, kw, kb = jax.random.split(key, 3)

    x = jax.random.normal(kx, (B, Cin, H, W), dtype=jnp.float32)

    # Deterministic init mirroring nn.Conv2d default (uniform +-1/sqrt(fan_in)).
    fan_in = Cin * 3 * 3
    bound = 1.0 / (fan_in ** 0.5)
    weight = jax.random.uniform(kw, (3, 3, Cin, Cout), jnp.float32,
                                minval=-bound, maxval=bound)
    bias = jax.random.uniform(kb, (Cout,), jnp.float32,
                              minval=-bound, maxval=bound)

    ref = jax.block_until_ready(_reference(x, weight, bias))

    # Default path: f32 end-to-end (matches the PyTorch module's numerics).
    out_f32 = jax.block_until_ready(conv_block_forward(x, weight, bias))
    assert out_f32.shape == (B, Cout, H, W)
    assert jnp.allclose(out_f32, ref, atol=1e-4, rtol=1e-4), "f32 path mismatch"

    # Opt-in fast path: bf16 activations/weights on the wire and into the MXU.
    out_bf16 = jax.block_until_ready(
        conv_block_forward(x, weight, bias, compute_dtype=jnp.bfloat16))
    assert out_bf16.shape == (B, Cout, H, W)
    assert jnp.allclose(out_bf16, ref, atol=5e-2, rtol=5e-2), "bf16 path mismatch"

    print("KERNEL_OK")
</pallas_src>

<mosaic_0001>
module attributes {stable_mosaic.version = 11 : i64} {
  func.func @conv_relu_kernel(%arg0: i32, %arg1: memref<1x4x256xf32, #tpu.memory_space<vmem>>, %arg2: memref<9x8x4xf32, #tpu.memory_space<vmem>>, %arg3: memref<8x1xf32, #tpu.memory_space<vmem>>, %arg4: memref<1x8x256xf32, #tpu.memory_space<vmem>>) attributes {dimension_semantics = [#tpu.dimension_semantics<parallel>], iteration_bounds = array<i64: 2>, scalar_prefetch = 0 : i64, scratch_operands = 0 : i64, tpu.core_type = #tpu.core_type<tc>, window_params = [{transform_indices = @transform_0, window_bounds = array<i64: 1, 4, 256>}, {pipeline_mode = #tpu.pipeline_mode<synchronous>, transform_indices = @transform_1, window_bounds = array<i64: 9, 8, 4>}, {pipeline_mode = #tpu.pipeline_mode<synchronous>, transform_indices = @transform_2, window_bounds = array<i64: 8, 1>}, {transform_indices = @transform_3, window_bounds = array<i64: 1, 8, 256>}]} {
    %c0 = arith.constant 0 : index
    %c0_0 = arith.constant 0 : index
    %0 = vector.load %arg3[%c0, %c0_0] : memref<8x1xf32, #tpu.memory_space<vmem>>, vector<8x1xf32>
    %1 = tpu.iota {dimensions = array<i32: 1>} : vector<4x256xi32>
    %c15_i32 = arith.constant 15 : i32
    %2 = vector.broadcast %c15_i32 : i32 to vector<4x256xi32>
    %3 = arith.andi %1, %2 : vector<4x256xi32>
    %c4_i32 = arith.constant 4 : i32
    %4 = vector.broadcast %c4_i32 : i32 to vector<4x256xi32>
    %5 = arith.shrsi %1, %4 : vector<4x256xi32>
    %c0_i32 = arith.constant 0 : i32
    %6 = vector.broadcast %c0_i32 : i32 to vector<4x256xi32>
    %7 = arith.cmpi sgt, %3, %6 : vector<4x256xi32>
    %c15_i32_1 = arith.constant 15 : i32
    %8 = vector.broadcast %c15_i32_1 : i32 to vector<4x256xi32>
    %9 = arith.cmpi slt, %3, %8 : vector<4x256xi32>
    %c0_i32_2 = arith.constant 0 : i32
    %10 = vector.broadcast %c0_i32_2 : i32 to vector<4x256xi32>
    %11 = arith.cmpi sgt, %5, %10 : vector<4x256xi32>
    %c15_i32_3 = arith.constant 15 : i32
    %12 = vector.broadcast %c15_i32_3 : i32 to vector<4x256xi32>
    %13 = arith.cmpi slt, %5, %12 : vector<4x256xi32>
    %14 = arith.andi %11, %7 : vector<4x256xi1>
    %15 = arith.andi %11, %9 : vector<4x256xi1>
    %16 = arith.andi %13, %7 : vector<4x256xi1>
    %17 = arith.andi %13, %9 : vector<4x256xi1>
    %c0_4 = arith.constant 0 : index
    %c0_5 = arith.constant 0 : index
    %c0_6 = arith.constant 0 : index
    %18 = vector.load %arg1[%c0_4, %c0_5, %c0_6] : memref<1x4x256xf32, #tpu.memory_space<vmem>>, vector<1x4x256xf32>
    %19 = vector.shape_cast %18 : vector<1x4x256xf32> to vector<4x256xf32>
    %c17_i32 = arith.constant 17 : i32
    %20 = tpu.dynamic_rotate %19 by %c17_i32 dim 1 : vector<4x256xf32>, i32 -> vector<4x256xf32>
    %cst = arith.constant 0.000000e+00 : f32
    %21 = vector.broadcast %cst : f32 to vector<4x256xf32>
    %22 = arith.select %14, %20, %21 : vector<4x256xi1>, vector<4x256xf32>
    %c0_7 = arith.constant 0 : index
    %c0_8 = arith.constant 0 : index
    %c0_9 = arith.constant 0 : index
    %23 = vector.load %arg2[%c0_7, %c0_8, %c0_9] : memref<9x8x4xf32, #tpu.memory_space<vmem>>, vector<1x8x4xf32>
    %24 = vector.shape_cast %23 : vector<1x8x4xf32> to vector<8x4xf32>
    %cst_10 = arith.constant dense<0.000000e+00> : vector<8x256xf32>
    %25 = tpu.matmul %24, %22, %cst_10 {dimension_numbers = #tpu.dot_dimension_numbers<[1], [0], [0], [1], [0, 0, 1, 1], [], []>} : vector<8x4xf32>, vector<4x256xf32>, vector<8x256xf32> -> vector<8x256xf32>
    %c16_i32 = arith.constant 16 : i32
    %26 = tpu.dynamic_rotate %19 by %c16_i32 dim 1 : vector<4x256xf32>, i32 -> vector<4x256xf32>
    %cst_11 = arith.constant 0.000000e+00 : f32
    %27 = vector.broadcast %cst_11 : f32 to vector<4x256xf32>
    %28 = arith.select %11, %26, %27 : vector<4x256xi1>, vector<4x256xf32>
    %c1 = arith.constant 1 : index
    %c0_12 = arith.constant 0 : index
    %c0_13 = arith.constant 0 : index
    %29 = vector.load %arg2[%c1, %c0_12, %c0_13] : memref<9x8x4xf32, #tpu.memory_space<vmem>>, vector<1x8x4xf32>
    %30 = vector.shape_cast %29 : vector<1x8x4xf32> to vector<8x4xf32>
    %cst_14 = arith.constant dense<0.000000e+00> : vector<8x256xf32>
    %31 = tpu.matmul %30, %28, %cst_14 {dimension_numbers = #tpu.dot_dimension_numbers<[1], [0], [0], [1], [0, 0, 1, 1], [], []>} : vector<8x4xf32>, vector<4x256xf32>, vector<8x256xf32> -> vector<8x256xf32>
    %32 = arith.addf %25, %31 : vector<8x256xf32>
    %c15_i32_15 = arith.constant 15 : i32
    %33 = tpu.dynamic_rotate %19 by %c15_i32_15 dim 1 : vector<4x256xf32>, i32 -> vector<4x256xf32>
    %cst_16 = arith.constant 0.000000e+00 : f32
    %34 = vector.broadcast %cst_16 : f32 to vector<4x256xf32>
    %35 = arith.select %15, %33, %34 : vector<4x256xi1>, vector<4x256xf32>
    %c2 = arith.constant 2 : index
    %c0_17 = arith.constant 0 : index
    %c0_18 = arith.constant 0 : index
    %36 = vector.load %arg2[%c2, %c0_17, %c0_18] : memref<9x8x4xf32, #tpu.memory_space<vmem>>, vector<1x8x4xf32>
    %37 = vector.shape_cast %36 : vector<1x8x4xf32> to vector<8x4xf32>
    %cst_19 = arith.constant dense<0.000000e+00> : vector<8x256xf32>
    %38 = tpu.matmul %37, %35, %cst_19 {dimension_numbers = #tpu.dot_dimension_numbers<[1], [0], [0], [1], [0, 0, 1, 1], [], []>} : vector<8x4xf32>, vector<4x256xf32>, vector<8x256xf32> -> vector<8x256xf32>
    %39 = arith.addf %32, %38 : vector<8x256xf32>
    %c1_i32 = arith.constant 1 : i32
    %40 = tpu.dynamic_rotate %19 by %c1_i32 dim 1 : vector<4x256xf32>, i32 -> vector<4x256xf32>
    %cst_20 = arith.constant 0.000000e+00 : f32
    %41 = vector.broadcast %cst_20 : f32 to vector<4x256xf32>
    %42 = arith.select %7, %40, %41 : vector<4x256xi1>, vector<4x256xf32>
    %c3 = arith.constant 3 : index
    %c0_21 = arith.constant 0 : index
    %c0_22 = arith.constant 0 : index
    %43 = vector.load %arg2[%c3, %c0_21, %c0_22] : memref<9x8x4xf32, #tpu.memory_space<vmem>>, vector<1x8x4xf32>
    %44 = vector.shape_cast %43 : vector<1x8x4xf32> to vector<8x4xf32>
    %cst_23 = arith.constant dense<0.000000e+00> : vector<8x256xf32>
    %45 = tpu.matmul %44, %42, %cst_23 {dimension_numbers = #tpu.dot_dimension_numbers<[1], [0], [0], [1], [0, 0, 1, 1], [], []>} : vector<8x4xf32>, vector<4x256xf32>, vector<8x256xf32> -> vector<8x256xf32>
    %46 = arith.addf %39, %45 : vector<8x256xf32>
    %c4 = arith.constant 4 : index
    %c0_24 = arith.constant 0 : index
    %c0_25 = arith.constant 0 : index
    %47 = vector.load %arg2[%c4, %c0_24, %c0_25] : memref<9x8x4xf32, #tpu.memory_space<vmem>>, vector<1x8x4xf32>
    %48 = vector.shape_cast %47 : vector<1x8x4xf32> to vector<8x4xf32>
    %cst_26 = arith.constant dense<0.000000e+00> : vector<8x256xf32>
    %49 = tpu.matmul %48, %19, %cst_26 {dimension_numbers = #tpu.dot_dimension_numbers<[1], [0], [0], [1], [0, 0, 1, 1], [], []>} : vector<8x4xf32>, vector<4x256xf32>, vector<8x256xf32> -> vector<8x256xf32>
    %50 = arith.addf %46, %49 : vector<8x256xf32>
    %c255_i32 = arith.constant 255 : i32
    %51 = tpu.dynamic_rotate %19 by %c255_i32 dim 1 : vector<4x256xf32>, i32 -> vector<4x256xf32>
    %cst_27 = arith.constant 0.000000e+00 : f32
    %52 = vector.broadcast %cst_27 : f32 to vector<4x256xf32>
    %53 = arith.select %9, %51, %52 : vector<4x256xi1>, vector<4x256xf32>
    %c5 = arith.constant 5 : index
    %c0_28 = arith.constant 0 : index
    %c0_29 = arith.constant 0 : index
    %54 = vector.load %arg2[%c5, %c0_28, %c0_29] : memref<9x8x4xf32, #tpu.memory_space<vmem>>, vector<1x8x4xf32>
    %55 = vector.shape_cast %54 : vector<1x8x4xf32> to vector<8x4xf32>
    %cst_30 = arith.constant dense<0.000000e+00> : vector<8x256xf32>
    %56 = tpu.matmul %55, %53, %cst_30 {dimension_numbers = #tpu.dot_dimension_numbers<[1], [0], [0], [1], [0, 0, 1, 1], [], []>} : vector<8x4xf32>, vector<4x256xf32>, vector<8x256xf32> -> vector<8x256xf32>
    %57 = arith.addf %50, %56 : vector<8x256xf32>
    %c241_i32 = arith.constant 241 : i32
    %58 = tpu.dynamic_rotate %19 by %c241_i32 dim 1 : vector<4x256xf32>, i32 -> vector<4x256xf32>
    %cst_31 = arith.constant 0.000000e+00 : f32
    %59 = vector.broadcast %cst_31 : f32 to vector<4x256xf32>
    %60 = arith.select %16, %58, %59 : vector<4x256xi1>, vector<4x256xf32>
    %c6 = arith.constant 6 : index
    %c0_32 = arith.constant 0 : index
    %c0_33 = arith.constant 0 : index
    %61 = vector.load %arg2[%c6, %c0_32, %c0_33] : memref<9x8x4xf32, #tpu.memory_space<vmem>>, vector<1x8x4xf32>
    %62 = vector.shape_cast %61 : vector<1x8x4xf32> to vector<8x4xf32>
    %cst_34 = arith.constant dense<0.000000e+00> : vector<8x256xf32>
    %63 = tpu.matmul %62, %60, %cst_34 {dimension_numbers = #tpu.dot_dimension_numbers<[1], [0], [0], [1], [0, 0, 1, 1], [], []>} : vector<8x4xf32>, vector<4x256xf32>, vector<8x256xf32> -> vector<8x256xf32>
    %64 = arith.addf %57, %63 : vector<8x256xf32>
    %c240_i32 = arith.constant 240 : i32
    %65 = tpu.dynamic_rotate %19 by %c240_i32 dim 1 : vector<4x256xf32>, i32 -> vector<4x256xf32>
    %cst_35 = arith.constant 0.000000e+00 : f32
    %66 = vector.broadcast %cst_35 : f32 to vector<4x256xf32>
    %67 = arith.select %13, %65, %66 : vector<4x256xi1>, vector<4x256xf32>
    %c7 = arith.constant 7 : index
    %c0_36 = arith.constant 0 : index
    %c0_37 = arith.constant 0 : index
    %68 = vector.load %arg2[%c7, %c0_36, %c0_37] : memref<9x8x4xf32, #tpu.memory_space<vmem>>, vector<1x8x4xf32>
    %69 = vector.shape_cast %68 : vector<1x8x4xf32> to vector<8x4xf32>
    %cst_38 = arith.constant dense<0.000000e+00> : vector<8x256xf32>
    %70 = tpu.matmul %69, %67, %cst_38 {dimension_numbers = #tpu.dot_dimension_numbers<[1], [0], [0], [1], [0, 0, 1, 1], [], []>} : vector<8x4xf32>, vector<4x256xf32>, vector<8x256xf32> -> vector<8x256xf32>
    %71 = arith.addf %64, %70 : vector<8x256xf32>
    %c239_i32 = arith.constant 239 : i32
    %72 = tpu.dynamic_rotate %19 by %c239_i32 dim 1 : vector<4x256xf32>, i32 -> vector<4x256xf32>
    %cst_39 = arith.constant 0.000000e+00 : f32
    %73 = vector.broadcast %cst_39 : f32 to vector<4x256xf32>
    %74 = arith.select %17, %72, %73 : vector<4x256xi1>, vector<4x256xf32>
    %c8 = arith.constant 8 : index
    %c0_40 = arith.constant 0 : index
    %c0_41 = arith.constant 0 : index
    %75 = vector.load %arg2[%c8, %c0_40, %c0_41] : memref<9x8x4xf32, #tpu.memory_space<vmem>>, vector<1x8x4xf32>
    %76 = vector.shape_cast %75 : vector<1x8x4xf32> to vector<8x4xf32>
    %cst_42 = arith.constant dense<0.000000e+00> : vector<8x256xf32>
    %77 = tpu.matmul %76, %74, %cst_42 {dimension_numbers = #tpu.dot_dimension_numbers<[1], [0], [0], [1], [0, 0, 1, 1], [], []>} : vector<8x4xf32>, vector<4x256xf32>, vector<8x256xf32> -> vector<8x256xf32>
    %78 = arith.addf %71, %77 : vector<8x256xf32>
    %79 = vector.broadcast %0 : vector<8x1xf32> to vector<8x256xf32>
    %80 = arith.addf %78, %79 : vector<8x256xf32>
    %cst_43 = arith.constant 0.000000e+00 : f32
    %81 = vector.broadcast %cst_43 : f32 to vector<8x256xf32>
    %82 = arith.maximumf %80, %81 : vector<8x256xf32>
    %c0_44 = arith.constant 0 : index
    %c0_45 = arith.constant 0 : index
    %c0_46 = arith.constant 0 : index
    %83 = vector.load %arg4[%c0_44, %c0_45, %c0_46] : memref<1x8x256xf32, #tpu.memory_space<vmem>>, vector<1x8x256xf32>
    %84 = vector.shape_cast %83 : vector<1x8x256xf32> to vector<8x256xf32>
    %85 = vector.shape_cast %82 : vector<8x256xf32> to vector<1x8x256xf32>
    tpu.vector_store %arg4[%c0_44, %c0_45, %c0_46], %85 {strides = array<i32>} : memref<1x8x256xf32, #tpu.memory_space<vmem>>, vector<1x8x256xf32>,
    return
  }
  func.func @transform_0(%arg0: i32) -> (i32, i32, i32) {
    %c0_i32 = arith.constant 0 : i32
    %c0_i32_0 = arith.constant 0 : i32
    %c0_i32_1 = arith.constant 0 : i32
    return %arg0, %c0_i32, %c0_i32_0 : i32, i32, i32
  }
  func.func @transform_1(%arg0: i32) -> (i32, i32, i32) {
    %c0_i32 = arith.constant 0 : i32
    %c0_i32_0 = arith.constant 0 : i32
    %c0_i32_1 = arith.constant 0 : i32
    %c0_i32_2 = arith.constant 0 : i32
    return %c0_i32, %c0_i32_0, %c0_i32_1 : i32, i32, i32
  }
  func.func @transform_2(%arg0: i32) -> (i32, i32) {
    %c0_i32 = arith.constant 0 : i32
    %c0_i32_0 = arith.constant 0 : i32
    %c0_i32_1 = arith.constant 0 : i32
    return %c0_i32, %c0_i32_0 : i32, i32
  }
  func.func @transform_3(%arg0: i32) -> (i32, i32, i32) {
    %c0_i32 = arith.constant 0 : i32
    %c0_i32_0 = arith.constant 0 : i32
    %c0_i32_1 = arith.constant 0 : i32
    return %arg0, %c0_i32, %c0_i32_0 : i32, i32, i32
  }
}

</mosaic_0001>

<llo_original>
// kernel: tpu_custom_call.1
$region0: #{tpu_custom_call.1}
  #allocation0 [shape = 'u32[]', space=smem, size = 0x4, offset = 0x4, fixed_abs, tag = 'smem constant byte address 0x4 - core index']
  #allocation1 [shape = 'u32[144,128]{1,0:T(1,128)}', space=vmem, size = 0x12000, scoped, tag = 'internal scratch']
  %s0 = inlined_call_operand.vmem [shape: f32[2,4,256], index: 0, kind: input, shape index: {}]
  %s1 = inlined_call_operand.vmem [shape: f32[9,8,4], index: 1, kind: input, shape index: {}]
  %s2 = inlined_call_operand.vmem [shape: f32[8,1], index: 2, kind: input, shape index: {}]
  %s3 = inlined_call_operand.hbm [shape: f32[2,8,256], index: 3, kind: output, shape index: {}]
  %s4 = sld [smem:[#allocation0]]
  $region45: #{tpu_custom_call.1} parent=0
    _
  %s6 = ssub.s32 1, %s4
  %s7 = scalar_select 0, %s6, %s4
  $region1: #{tpu_custom_call.1} parent=0
    #allocation2 [shape = 'u8[16384]{0}', space=vmem, size = 0x4000, scoped, tag = 'output window, operand 0']
    #allocation3 [shape = 's32[2]{0}', space=sflag, size = 0x8, scoped, tag = 'scoped memory for tpu_custom_call.1']
    %8 = vsyncpa [#allocation3], 0
    %s9 = scalar_lea.sflag [#allocation3], 1
    %10 = vsyncpa %s9, 0
    loop: start=0, step=1, limit=4
    $region2: #{tpu_custom_call.1} parent=1 // loop_pre_header
      _
    $region3: #{tpu_custom_call.1} parent=1 // loop_header
      %s12 = sphi 0, %s16
      %p13 = scmp.ge.s32.totalorder %s12, 4
      %s22 = sphi 0, %s24
      %s25 = sphi 0, %s22
      %s26 = sphi 0, %s25
      %s42 = sphi 0, %s26
      %s46 = sphi 0, %s46
      %s48 = sphi 0, %s46
      %s49 = sphi 0, %s48
      %s63 = sphi 0, %s49
      %s67 = sphi 0, %s67
      %s69 = sphi 0, %s67
      %s70 = sphi 0, %s69
      %s84 = sphi 0, %s70
      %s90 = sphi 0, %s92
      %s93 = sphi 0, %s90
      %s94 = sphi 0, %s93
      %s110 = sphi 0, %s94
    $region4: #{tpu_custom_call.1} parent=1 // loop_header_branch
      %15 = sbr.rel (%p13) target = $region8
    $region5: #{tpu_custom_call.1} parent=1 // loop_body
      %s17 = ssub.s32 %s12, 1
      %s18 = ssub.s32 %s12, 2
      %s19 = sadd.s32 %s12, 1
      %s20 = ssub.s32 %s12, %s19
      %p21 = scmp.eq.s32.totalorder %s20, 0
      %s23 = sadd.s32 %s22, 1
      %s24 = scalar_select %p21, %s22, %s23
      %p27 = pneg %p21
      %p28 = scmp.eq.s32.totalorder %s12, 1
      %p29 = por %p27, %p28
      %p30 = scmp.ne.s32.totalorder %s22, %s25
      %p31 = scmp.eq.s32.totalorder %s12, 0
      %p32 = por %p30, %p31
      %p33 = scmp.ne.s32.totalorder %s22, %s25
      %p34 = scmp.eq.s32.totalorder %s17, 1
      %p35 = por %p33, %p34
      %p36 = scmp.ne.s32.totalorder %s25, %s26
      %p37 = scmp.eq.s32.totalorder %s17, 0
      %p38 = por %p36, %p37
      %p39 = scmp.ne.s32.totalorder %s25, %s26
      %p40 = scmp.eq.s32.totalorder %s18, 1
      %p41 = por %p39, %p40
      %p43 = scmp.ne.s32.totalorder %s26, %s42
      %p44 = scmp.eq.s32.totalorder %s18, 0
      %p45 = por %p43, %p44
      %s47 = sadd.s32 %s46, 1
      %p50 = scmp.eq.s32.totalorder %s12, 1
      %p51 = scmp.ne.s32.totalorder %s46, %s48
      %p52 = scmp.eq.s32.totalorder %s12, 0
      %p53 = por %p51, %p52
      %p54 = scmp.ne.s32.totalorder %s46, %s48
      %p55 = scmp.eq.s32.totalorder %s17, 1
      %p56 = por %p54, %p55
      %p57 = scmp.ne.s32.totalorder %s48, %s49
      %p58 = scmp.eq.s32.totalorder %s17, 0
      %p59 = por %p57, %p58
      %p60 = scmp.ne.s32.totalorder %s48, %s49
      %p61 = scmp.eq.s32.totalorder %s18, 1
      %p62 = por %p60, %p61
      %p64 = scmp.ne.s32.totalorder %s49, %s63
      %p65 = scmp.eq.s32.totalorder %s18, 0
      %p66 = por %p64, %p65
      %s68 = sadd.s32 %s67, 1
      %p71 = scmp.eq.s32.totalorder %s12, 1
      %p72 = scmp.ne.s32.totalorder %s67, %s69
      %p73 = scmp.eq.s32.totalorder %s12, 0
      %p74 = por %p72, %p73
      %p75 = scmp.ne.s32.totalorder %s67, %s69
      %p76 = scmp.eq.s32.totalorder %s17, 1
      %p77 = por %p75, %p76
      %p78 = scmp.ne.s32.totalorder %s69, %s70
      %p79 = scmp.eq.s32.totalorder %s17, 0
      %p80 = por %p78, %p79
      %p81 = scmp.ne.s32.totalorder %s69, %s70
      %p82 = scmp.eq.s32.totalorder %s18, 1
      %p83 = por %p81, %p82
      %p85 = scmp.ne.s32.totalorder %s70, %s84
      %p86 = scmp.eq.s32.totalorder %s18, 0
      %p87 = por %p85, %p86
      %s88 = ssub.s32 %s12, %s19
      %p89 = scmp.eq.s32.totalorder %s88, 0
      %s91 = sadd.s32 %s90, 1
      %s92 = scalar_select %p89, %s90, %s91
      %p95 = pneg %p89
      %p96 = scmp.eq.s32.totalorder %s12, 1
      %p97 = por %p95, %p96
      %p98 = scmp.ne.s32.totalorder %s90, %s93
      %p99 = scmp.eq.s32.totalorder %s12, 0
      %p100 = por %p98, %p99
      %p101 = scmp.ne.s32.totalorder %s90, %s93
      %p102 = scmp.eq.s32.totalorder %s17, 1
      %p103 = por %p101, %p102
      %p104 = scmp.ne.s32.totalorder %s93, %s94
      %p105 = scmp.eq.s32.totalorder %s17, 0
      %p106 = por %p104, %p105
      %p107 = scmp.ne.s32.totalorder %s93, %s94
      %p108 = scmp.eq.s32.totalorder %s18, 1
      %p109 = por %p107, %p108
      %p111 = scmp.ne.s32.totalorder %s94, %s110
      %p112 = scmp.eq.s32.totalorder %s18, 0
      %p113 = por %p111, %p112
      %p114 = scmp.le.s32.totalorder 1, %s12
      %p115 = scmp.lt.s32.totalorder %s12, 3
      %p116 = pnand %p114, %p115
      %p117 = pneg %p116
      // Predicated region
      $region9: #{tpu_custom_call.1} parent=5 // pred_check
        _
      $region10: #{tpu_custom_call.1} parent=5 // pred_check_branch
        %119 = sbr.rel (%p116) target = $region12
      $region11: #{tpu_custom_call.1} parent=5 // pred_region
        %s120 = ssub.s32 %s12, 1
        // Predicated region
        $region13: #{tpu_custom_call.1} parent=11 // pred_check
          %p121 = pneg %p59
        $region14: #{tpu_custom_call.1} parent=11 // pred_check_branch
          %123 = sbr.rel (%p121) target = $region16
        $region15: #{tpu_custom_call.1} parent=11 // pred_region
          _
        $region16: #{tpu_custom_call.1} parent=11 // pred_fallthru
          _
        // Predicated region
        $region17: #{tpu_custom_call.1} parent=11 // pred_check
          %p124 = pneg %p80
        $region18: #{tpu_custom_call.1} parent=11 // pred_check_branch
          %126 = sbr.rel (%p124) target = $region20
        $region19: #{tpu_custom_call.1} parent=11 // pred_region
          _
        $region20: #{tpu_custom_call.1} parent=11 // pred_fallthru
          _
      $region12: #{tpu_custom_call.1} parent=5 // pred_fallthru
        _
      %p127 = scmp.lt.s32.totalorder %s12, 2
      // Predicated region
      $region21: #{tpu_custom_call.1} parent=5 // pred_check
        %p128 = pneg %p127
      $region22: #{tpu_custom_call.1} parent=5 // pred_check_branch
        %130 = sbr.rel (%p128) target = $region24
      $region23: #{tpu_custom_call.1} parent=5 // pred_region
        // Predicated region
        $region25: #{tpu_custom_call.1} parent=23 // pred_check
          %p131 = pneg %p32
        $region26: #{tpu_custom_call.1} parent=23 // pred_check_branch
          %133 = sbr.rel (%p131) target = $region28
        $region27: #{tpu_custom_call.1} parent=23 // pred_region
          %p134 = scmp.lt.s32.totalorder %s12, 1
          %s135 = scalar_select %p134, %s12, 1
          %s136 = smul.addr %s135, 2
          %s137 = smul.addr %s136, 4
          %s138 = scalar_lea.vmem %s0, %s137
        $region28: #{tpu_custom_call.1} parent=23 // pred_fallthru
          _
      $region24: #{tpu_custom_call.1} parent=5 // pred_fallthru
        _
      %p139 = scmp.le.s32.totalorder 1, %s12
      %p140 = scmp.lt.s32.totalorder %s12, 3
      %p141 = pnand %p139, %p140
      %p142 = pneg %p141
      // Predicated region
      $region29: #{tpu_custom_call.1} parent=5 // pred_check
        _
      $region30: #{tpu_custom_call.1} parent=5 // pred_check_branch
        %144 = sbr.rel (%p141) target = $region32
      $region31: #{tpu_custom_call.1} parent=5 // pred_region
        %s145 = ssub.s32 %s12, 1
        %p146 = scmp.lt.s32.totalorder %s17, 1
        %s147 = scalar_select %p146, %s17, 1
        %s148 = smul.addr %s147, 2
        %s149 = smul.addr %s148, 4
        %s150 = scalar_lea.vmem %s0, %s149
        %p151 = pneg %p38
        %p152 = pneg %p35
        %p153 = pneg %p59
        %p154 = pneg %p56
        %p155 = pneg %p80
        %p156 = pneg %p77
        %p157 = pneg %p106
        %p158 = pneg %p103
        %s159 = sand.u32 %s93, 1
        %s160 = scalar_lea.sflag [#allocation3], %s159
        %s161 = sand.u32 %s93, 1
        %s162 = smul.addr %s161, 16
        %s163 = scalar_lea.vmem [#allocation2], %s162
        %p164 = scmp.lt.s32.totalorder %s17, 1
        %s165 = scalar_select %p164, %s17, 1
        %s166 = smul.addr %s165, 2
        %s167 = smul.addr %s166, 4
        %s168 = scalar_lea.vmem %s0, %s167
        %v169 = vld [vmem:[%s2] sm:$0xff]
        %v170 = vlaneseq
        %v171 = vand.u32 %v170, 127
        %v172 = vadd.s32 %v171, 128
        %v173 = vand.u32 %v171, 15
        %v174 = vand.u32 %v172, 15
        %v175 = vshra.s32 %v171, 4
        %v176 = vshra.s32 %v172, 4
        %vm177 = vcmp.gt.s32.totalorder %v173, 0
        %vm178 = vcmp.gt.s32.totalorder %v174, 0
        %vm179 = vcmp.lt.s32.totalorder %v173, 15
        %vm180 = vcmp.lt.s32.totalorder %v174, 15
        %vm181 = vcmp.gt.s32.totalorder %v175, 0
        %vm182 = vcmp.gt.s32.totalorder %v176, 0
        %vm183 = vcmp.lt.s32.totalorder %v175, 15
        %vm184 = vcmp.lt.s32.totalorder %v176, 15
        %vm185 = vmand %vm181, %vm177
        %vm186 = vmand %vm182, %vm178
        %vm187 = vmand %vm181, %vm179
        %vm188 = vmand %vm182, %vm180
        %vm189 = vmand %vm183, %vm177
        %vm190 = vmand %vm184, %vm178
        %vm191 = vmand %vm183, %vm179
        %vm192 = vmand %vm184, %vm180
        %v193 = vld [vmem:[%s168] sm:$0xff]
        %v195 = vcombine.high %v193, %v193
        %197 = vrot.lane.b32.xlu0 %v193, 17
        %v198 = vpop.permute.xlu0 %197
        %199 = vrot.lane.b32.xlu0 %v195, 17
        %v200 = vpop.permute.xlu0 %199
        %vm201 = vcmp.lt.s32.totalorder %v171, 17
        %v202 = vsel %vm201, %v198, %v200
        %v203 = vsel %vm201, %v200, %v198
        %v204 = vsel %vm185, %v203, 0.0
        %v205 = vsel %vm186, %v202, 0.0
        %v206 = vld [vmem:[%s1] sm:$0xff]
        %207 = vrot.lane.b32.xlu0 %v193, 16
        %v208 = vpop.permute.xlu0 %207
        %209 = vrot.lane.b32.xlu0 %v195, 16
        %v210 = vpop.permute.xlu0 %209
        %vm211 = vcmp.lt.s32.totalorder %v171, 16
        %v212 = vsel %vm211, %v208, %v210
        %v213 = vsel %vm211, %v210, %v208
        %v214 = vsel %vm181, %v213, 0.0
        %v215 = vsel %vm182, %v212, 0.0
        %s216 = scalar_lea.vmem %s1, 8
        %v217 = vld [vmem:[%s216] sm:$0xff]
        %vm218 = vcmask 31744
        %v220 = vsel %vm218, %v217, 0
        %vm222 = vcmask 1043456
        %v224 = vsel %vm222, %v214, 0
        %v227 = vsel %vm222, %v215, 0
        %229 = vmatprep.subr.mxu0 %v227
        %230 = vmatpush1.msra.mxu0 %v224
        %231 = vmatprep.subr.mxu0 0.0
        %232 = vmatpush1.msra.mxu0 0.0
        %233 = vmatprep.subr.mxu0 0.0
        %234 = vmatpush1.msra.mxu0 0.0
        %235 = vmatprep.subr.mxu0 0.0
        %236 = vmatpush1.msra.mxu0 0.0
        %237 = vmatprep.subr.mxu0 0.0
        %238 = vmatpush1.msra.mxu0 0.0
        %239 = vmatprep.subr.mxu0 0.0
        %240 = vmatpush1.msra.mxu0 0.0
        %241 = vmatprep.subr.mxu0 0.0
        %242 = vmatpush1.msra.mxu0 0.0
        %243 = vmatprep.subr.mxu0 0.0
        %244 = vmatpush1.msra.mxu0 0.0
        %245 = vmatprep.subr.mxu0 0.0
        %246 = vmatpush1.msra.mxu0 0.0
        %247 = vmatprep.subr.mxu0 0.0
        %248 = vmatpush1.msra.mxu0 0.0
        %249 = vmatprep.subr.mxu0 0.0
        %250 = vmatpush1.msra.mxu0 0.0
        %251 = vmatprep.subr.mxu0 0.0
        %252 = vmatpush1.msra.mxu0 0.0
        %253 = vmatprep.subr.mxu0 0.0
        %254 = vmatpush1.msra.mxu0 0.0
        %255 = vmatprep.subr.mxu0 0.0
        %256 = vmatpush1.msra.mxu0 0.0
        %257 = vmatprep.subr.mxu0 0.0
        %258 = vmatpush1.msra.mxu0 0.0
        %259 = vmatprep.subr.mxu0 0.0
        %260 = vmatpush1.msra.mxu0 0.0
        %261 = vmatprep.subr.mxu0 0.0
        %262 = vmatpush1.msra.mxu0 0.0
        %263 = vmatprep.subr.mxu0 0.0
        %264 = vmatpush1.msra.mxu0 0.0
        %265 = vmatprep.subr.mxu0 0.0
        %266 = vmatpush1.msra.mxu0 0.0
        %267 = vmatprep.subr.mxu0 0.0
        %268 = vmatpush1.msra.mxu0 0.0
        %269 = vmatprep.subr.mxu0 0.0
        %270 = vmatpush1.msra.mxu0 0.0
        %271 = vmatprep.subr.mxu0 0.0
        %272 = vmatpush1.msra.mxu0 0.0
        %273 = vmatprep.subr.mxu0 0.0
        %274 = vmatpush1.msra.mxu0 0.0
        %275 = vmatprep.subr.mxu0 0.0
        %276 = vmatpush1.msra.mxu0 0.0
        %277 = vmatprep.subr.mxu0 0.0
        %278 = vmatpush1.msra.mxu0 0.0
        %279 = vmatprep.subr.mxu0 0.0
        %280 = vmatpush1.msra.mxu0 0.0
        %281 = vmatprep.subr.mxu0 0.0
        %282 = vmatpush1.msra.mxu0 0.0
        %283 = vmatprep.subr.mxu0 0.0
        %284 = vmatpush1.msra.mxu0 0.0
        %285 = vmatprep.subr.mxu0 0.0
        %286 = vmatpush1.msra.mxu0 0.0
        %287 = vmatprep.subr.mxu0 0.0
        %288 = vmatpush1.msra.mxu0 0.0
        %289 = vmatprep.subr.mxu0 0.0
        %290 = vmatpush1.msra.mxu0 0.0
        %291 = vmatprep.subr.mxu0 0.0
        %292 = vmatpush1.msra.mxu0 0.0
        %293 = vmatprep.mubr.f32.mxu0 0.0
        %294 = vmatmul.mubr.f32.gmra.mrb[0].mxu0 %v220
        %v295 = vpop.f32.mrb[0].mxu0
        %v296 = vadd.f32 0.0, %v295
        %v297 = vpop.f32.mrb[0].mxu0
        %v298 = vadd.f32 0.0, %v297
        %299 = vdwg.mxu0
        %v301 = vsel %vm218, %v206, 0
        %v304 = vsel %vm222, %v204, 0
        %v307 = vsel %vm222, %v205, 0
        %309 = vmatprep.subr.mxu0 %v307
        %310 = vmatpush1.msra.mxu0 %v304
        %311 = vmatprep.subr.mxu0 0.0
        %312 = vmatpush1.msra.mxu0 0.0
        %313 = vmatprep.subr.mxu0 0.0
        %314 = vmatpush1.msra.mxu0 0.0
        %315 = vmatprep.subr.mxu0 0.0
        %316 = vmatpush1.msra.mxu0 0.0
        %317 = vmatprep.subr.mxu0 0.0
        %318 = vmatpush1.msra.mxu0 0.0
        %319 = vmatprep.subr.mxu0 0.0
        %320 = vmatpush1.msra.mxu0 0.0
        %321 = vmatprep.subr.mxu0 0.0
        %322 = vmatpush1.msra.mxu0 0.0
        %323 = vmatprep.subr.mxu0 0.0
        %324 = vmatpush1.msra.mxu0 0.0
        %325 = vmatprep.subr.mxu0 0.0
        %326 = vmatpush1.msra.mxu0 0.0
        %327 = vmatprep.subr.mxu0 0.0
        %328 = vmatpush1.msra.mxu0 0.0
        %329 = vmatprep.subr.mxu0 0.0
        %330 = vmatpush1.msra.mxu0 0.0
        %331 = vmatprep.subr.mxu0 0.0
        %332 = vmatpush1.msra.mxu0 0.0
        %333 = vmatprep.subr.mxu0 0.0
        %334 = vmatpush1.msra.mxu0 0.0
        %335 = vmatprep.subr.mxu0 0.0
        %336 = vmatpush1.msra.mxu0 0.0
        %337 = vmatprep.subr.mxu0 0.0
        %338 = vmatpush1.msra.mxu0 0.0
        %339 = vmatprep.subr.mxu0 0.0
        %340 = vmatpush1.msra.mxu0 0.0
        %341 = vmatprep.subr.mxu0 0.0
        %342 = vmatpush1.msra.mxu0 0.0
        %343 = vmatprep.subr.mxu0 0.0
        %344 = vmatpush1.msra.mxu0 0.0
        %345 = vmatprep.subr.mxu0 0.0
        %346 = vmatpush1.msra.mxu0 0.0
        %347 = vmatprep.subr.mxu0 0.0
        %348 = vmatpush1.msra.mxu0 0.0
        %349 = vmatprep.subr.mxu0 0.0
        %350 = vmatpush1.msra.mxu0 0.0
        %351 = vmatprep.subr.mxu0 0.0
        %352 = vmatpush1.msra.mxu0 0.0
        %353 = vmatprep.subr.mxu0 0.0
        %354 = vmatpush1.msra.mxu0 0.0
        %355 = vmatprep.subr.mxu0 0.0
        %356 = vmatpush1.msra.mxu0 0.0
        %357 = vmatprep.subr.mxu0 0.0
        %358 = vmatpush1.msra.mxu0 0.0
        %359 = vmatprep.subr.mxu0 0.0
        %360 = vmatpush1.msra.mxu0 0.0
        %361 = vmatprep.subr.mxu0 0.0
        %362 = vmatpush1.msra.mxu0 0.0
        %363 = vmatprep.subr.mxu0 0.0
        %364 = vmatpush1.msra.mxu0 0.0
        %365 = vmatprep.subr.mxu0 0.0
        %366 = vmatpush1.msra.mxu0 0.0
        %367 = vmatprep.subr.mxu0 0.0
        %368 = vmatpush1.msra.mxu0 0.0
        %369 = vmatprep.subr.mxu0 0.0
        %370 = vmatpush1.msra.mxu0 0.0
        %371 = vmatprep.subr.mxu0 0.0
        %372 = vmatpush1.msra.mxu0 0.0
        %373 = vmatprep.mubr.f32.mxu0 0.0
        %374 = vmatmul.mubr.f32.gmra.mrb[0].mxu0 %v301
        %v375 = vpop.f32.mrb[0].mxu0
        %v376 = vadd.f32 %v296, %v375
        %v377 = vpop.f32.mrb[0].mxu0
        %v378 = vadd.f32 %v298, %v377
        %379 = vdwg.mxu0
        %380 = vrot.lane.b32.xlu0 %v193, 15
        %v381 = vpop.permute.xlu0 %380
        %382 = vrot.lane.b32.xlu0 %v195, 15
        %v383 = vpop.permute.xlu0 %382
        %vm384 = vcmp.lt.s32.totalorder %v171, 15
        %v385 = vsel %vm384, %v381, %v383
        %v386 = vsel %vm384, %v383, %v381
        %v387 = vsel %vm187, %v386, 0.0
        %v388 = vsel %vm188, %v385, 0.0
        %s389 = scalar_lea.vmem %s1, 16
        %v390 = vld [vmem:[%s389] sm:$0xff]
        %v392 = vsel %vm218, %v390, 0
        %v395 = vsel %vm222, %v387, 0
        %v398 = vsel %vm222, %v388, 0
        %400 = vmatprep.subr.mxu0 %v398
        %401 = vmatpush1.msra.mxu0 %v395
        %402 = vmatprep.subr.mxu0 0.0
        %403 = vmatpush1.msra.mxu0 0.0
        %404 = vmatprep.subr.mxu0 0.0
        %405 = vmatpush1.msra.mxu0 0.0
        %406 = vmatprep.subr.mxu0 0.0
        %407 = vmatpush1.msra.mxu0 0.0
        %408 = vmatprep.subr.mxu0 0.0
        %409 = vmatpush1.msra.mxu0 0.0
        %410 = vmatprep.subr.mxu0 0.0
        %411 = vmatpush1.msra.mxu0 0.0
        %412 = vmatprep.subr.mxu0 0.0
        %413 = vmatpush1.msra.mxu0 0.0
        %414 = vmatprep.subr.mxu0 0.0
        %415 = vmatpush1.msra.mxu0 0.0
        %416 = vmatprep.subr.mxu0 0.0
        %417 = vmatpush1.msra.mxu0 0.0
        %418 = vmatprep.subr.mxu0 0.0
        %419 = vmatpush1.msra.mxu0 0.0
        %420 = vmatprep.subr.mxu0 0.0
        %421 = vmatpush1.msra.mxu0 0.0
        %422 = vmatprep.subr.mxu0 0.0
        %423 = vmatpush1.msra.mxu0 0.0
        %424 = vmatprep.subr.mxu0 0.0
        %425 = vmatpush1.msra.mxu0 0.0
        %426 = vmatprep.subr.mxu0 0.0
        %427 = vmatpush1.msra.mxu0 0.0
        %428 = vmatprep.subr.mxu0 0.0
        %429 = vmatpush1.msra.mxu0 0.0
        %430 = vmatprep.subr.mxu0 0.0
        %431 = vmatpush1.msra.mxu0 0.0
        %432 = vmatprep.subr.mxu0 0.0
        %433 = vmatpush1.msra.mxu0 0.0
        %434 = vmatprep.subr.mxu0 0.0
        %435 = vmatpush1.msra.mxu0 0.0
        %436 = vmatprep.subr.mxu0 0.0
        %437 = vmatpush1.msra.mxu0 0.0
        %438 = vmatprep.subr.mxu0 0.0
        %439 = vmatpush1.msra.mxu0 0.0
        %440 = vmatprep.subr.mxu0 0.0
        %441 = vmatpush1.msra.mxu0 0.0
        %442 = vmatprep.subr.mxu0 0.0
        %443 = vmatpush1.msra.mxu0 0.0
        %444 = vmatprep.subr.mxu0 0.0
        %445 = vmatpush1.msra.mxu0 0.0
        %446 = vmatprep.subr.mxu0 0.0
        %447 = vmatpush1.msra.mxu0 0.0
        %448 = vmatprep.subr.mxu0 0.0
        %449 = vmatpush1.msra.mxu0 0.0
        %450 = vmatprep.subr.mxu0 0.0
        %451 = vmatpush1.msra.mxu0 0.0
        %452 = vmatprep.subr.mxu0 0.0
        %453 = vmatpush1.msra.mxu0 0.0
        %454 = vmatprep.subr.mxu0 0.0
        %455 = vmatpush1.msra.mxu0 0.0
        %456 = vmatprep.subr.mxu0 0.0
        %457 = vmatpush1.msra.mxu0 0.0
        %458 = vmatprep.subr.mxu0 0.0
        %459 = vmatpush1.msra.mxu0 0.0
        %460 = vmatprep.subr.mxu0 0.0
        %461 = vmatpush1.msra.mxu0 0.0
        %462 = vmatprep.subr.mxu0 0.0
        %463 = vmatpush1.msra.mxu0 0.0
        %464 = vmatprep.mubr.f32.mxu0 0.0
        %465 = vmatmul.mubr.f32.gmra.mrb[0].mxu0 %v392
        %v466 = vpop.f32.mrb[0].mxu0
        %v467 = vadd.f32 0.0, %v466
        %v468 = vpop.f32.mrb[0].mxu0
        %v469 = vadd.f32 0.0, %v468
        %470 = vdwg.mxu0
        %v471 = vadd.f32 %v376, %v467
        %v472 = vadd.f32 %v378, %v469
        %473 = vrot.lane.b32.xlu0 %v193, 1
        %v474 = vpop.permute.xlu0 %473
        %475 = vrot.lane.b32.xlu0 %v195, 1
        %v476 = vpop.permute.xlu0 %475
        %vm477 = vcmp.lt.s32.totalorder %v171, 1
        %v478 = vsel %vm477, %v474, %v476
        %v479 = vsel %vm477, %v476, %v474
        %v480 = vsel %vm177, %v479, 0.0
        %v481 = vsel %vm178, %v478, 0.0
        %s482 = scalar_lea.vmem %s1, 24
        %v483 = vld [vmem:[%s482] sm:$0xff]
        %v485 = vsel %vm218, %v483, 0
        %v488 = vsel %vm222, %v480, 0
        %v491 = vsel %vm222, %v481, 0
        %493 = vmatprep.subr.mxu0 %v491
        %494 = vmatpush1.msra.mxu0 %v488
        %495 = vmatprep.subr.mxu0 0.0
        %496 = vmatpush1.msra.mxu0 0.0
        %497 = vmatprep.subr.mxu0 0.0
        %498 = vmatpush1.msra.mxu0 0.0
        %499 = vmatprep.subr.mxu0 0.0
        %500 = vmatpush1.msra.mxu0 0.0
        %501 = vmatprep.subr.mxu0 0.0
        %502 = vmatpush1.msra.mxu0 0.0
        %503 = vmatprep.subr.mxu0 0.0
        %504 = vmatpush1.msra.mxu0 0.0
        %505 = vmatprep.subr.mxu0 0.0
        %506 = vmatpush1.msra.mxu0 0.0
        %507 = vmatprep.subr.mxu0 0.0
        %508 = vmatpush1.msra.mxu0 0.0
        %509 = vmatprep.subr.mxu0 0.0
        %510 = vmatpush1.msra.mxu0 0.0
        %511 = vmatprep.subr.mxu0 0.0
        %512 = vmatpush1.msra.mxu0 0.0
        %513 = vmatprep.subr.mxu0 0.0
        %514 = vmatpush1.msra.mxu0 0.0
        %515 = vmatprep.subr.mxu0 0.0
        %516 = vmatpush1.msra.mxu0 0.0
        %517 = vmatprep.subr.mxu0 0.0
        %518 = vmatpush1.msra.mxu0 0.0
        %519 = vmatprep.subr.mxu0 0.0
        %520 = vmatpush1.msra.mxu0 0.0
        %521 = vmatprep.subr.mxu0 0.0
        %522 = vmatpush1.msra.mxu0 0.0
        %523 = vmatprep.subr.mxu0 0.0
        %524 = vmatpush1.msra.mxu0 0.0
        %525 = vmatprep.subr.mxu0 0.0
        %526 = vmatpush1.msra.mxu0 0.0
        %527 = vmatprep.subr.mxu0 0.0
        %528 = vmatpush1.msra.mxu0 0.0
        %529 = vmatprep.subr.mxu0 0.0
        %530 = vmatpush1.msra.mxu0 0.0
        %531 = vmatprep.subr.mxu0 0.0
        %532 = vmatpush1.msra.mxu0 0.0
        %533 = vmatprep.subr.mxu0 0.0
        %534 = vmatpush1.msra.mxu0 0.0
        %535 = vmatprep.subr.mxu0 0.0
        %536 = vmatpush1.msra.mxu0 0.0
        %537 = vmatprep.subr.mxu0 0.0
        %538 = vmatpush1.msra.mxu0 0.0
        %539 = vmatprep.subr.mxu0 0.0
        %540 = vmatpush1.msra.mxu0 0.0
        %541 = vmatprep.subr.mxu0 0.0
        %542 = vmatpush1.msra.mxu0 0.0
        %543 = vmatprep.subr.mxu0 0.0
        %544 = vmatpush1.msra.mxu0 0.0
        %545 = vmatprep.subr.mxu0 0.0
        %546 = vmatpush1.msra.mxu0 0.0
        %547 = vmatprep.subr.mxu0 0.0
        %548 = vmatpush1.msra.mxu0 0.0
        %549 = vmatprep.subr.mxu0 0.0
        %550 = vmatpush1.msra.mxu0 0.0
        %551 = vmatprep.subr.mxu0 0.0
        %552 = vmatpush1.msra.mxu0 0.0
        %553 = vmatprep.subr.mxu0 0.0
        %554 = vmatpush1.msra.mxu0 0.0
        %555 = vmatprep.subr.mxu0 0.0
        %556 = vmatpush1.msra.mxu0 0.0
        %557 = vmatprep.mubr.f32.mxu0 0.0
        %558 = vmatmul.mubr.f32.gmra.mrb[0].mxu0 %v485
        %v559 = vpop.f32.mrb[0].mxu0
        %v560 = vadd.f32 0.0, %v559
        %v561 = vpop.f32.mrb[0].mxu0
        %v562 = vadd.f32 0.0, %v561
        %563 = vdwg.mxu0
        %v564 = vadd.f32 %v471, %v560
        %v565 = vadd.f32 %v472, %v562
        %s566 = scalar_lea.vmem %s1, 32
        %v567 = vld [vmem:[%s566] sm:$0xff]
        %v569 = vsel %vm218, %v567, 0
        %v571 = vsel %vm222, %v193, 0
        %v573 = vsel %vm222, %v195, 0
        %575 = vmatprep.subr.mxu0 %v573
        %576 = vmatpush1.msra.mxu0 %v571
        %577 = vmatprep.subr.mxu0 0.0
        %578 = vmatpush1.msra.mxu0 0.0
        %579 = vmatprep.subr.mxu0 0.0
        %580 = vmatpush1.msra.mxu0 0.0
        %581 = vmatprep.subr.mxu0 0.0
        %582 = vmatpush1.msra.mxu0 0.0
        %583 = vmatprep.subr.mxu0 0.0
        %584 = vmatpush1.msra.mxu0 0.0
        %585 = vmatprep.subr.mxu0 0.0
        %586 = vmatpush1.msra.mxu0 0.0
        %587 = vmatprep.subr.mxu0 0.0
        %588 = vmatpush1.msra.mxu0 0.0
        %589 = vmatprep.subr.mxu0 0.0
        %590 = vmatpush1.msra.mxu0 0.0
        %591 = vmatprep.subr.mxu0 0.0
        %592 = vmatpush1.msra.mxu0 0.0
        %593 = vmatprep.subr.mxu0 0.0
        %594 = vmatpush1.msra.mxu0 0.0
        %595 = vmatprep.subr.mxu0 0.0
        %596 = vmatpush1.msra.mxu0 0.0
        %597 = vmatprep.subr.mxu0 0.0
        %598 = vmatpush1.msra.mxu0 0.0
        %599 = vmatprep.subr.mxu0 0.0
        %600 = vmatpush1.msra.mxu0 0.0
        %601 = vmatprep.subr.mxu0 0.0
        %602 = vmatpush1.msra.mxu0 0.0
        %603 = vmatprep.subr.mxu0 0.0
        %604 = vmatpush1.msra.mxu0 0.0
        %605 = vmatprep.subr.mxu0 0.0
        %606 = vmatpush1.msra.mxu0 0.0
        %607 = vmatprep.subr.mxu0 0.0
        %608 = vmatpush1.msra.mxu0 0.0
        %609 = vmatprep.subr.mxu0 0.0
        %610 = vmatpush1.msra.mxu0 0.0
        %611 = vmatprep.subr.mxu0 0.0
        %612 = vmatpush1.msra.mxu0 0.0
        %613 = vmatprep.subr.mxu0 0.0
        %614 = vmatpush1.msra.mxu0 0.0
        %615 = vmatprep.subr.mxu0 0.0
        %616 = vmatpush1.msra.mxu0 0.0
        %617 = vmatprep.subr.mxu0 0.0
        %618 = vmatpush1.msra.mxu0 0.0
        %619 = vmatprep.subr.mxu0 0.0
        %620 = vmatpush1.msra.mxu0 0.0
        %621 = vmatprep.subr.mxu0 0.0
        %622 = vmatpush1.msra.mxu0 0.0
        %623 = vmatprep.subr.mxu0 0.0
        %624 = vmatpush1.msra.mxu0 0.0
        %625 = vmatprep.subr.mxu0 0.0
        %626 = vmatpush1.msra.mxu0 0.0
        %627 = vmatprep.subr.mxu0 0.0
        %628 = vmatpush1.msra.mxu0 0.0
        %629 = vmatprep.subr.mxu0 0.0
        %630 = vmatpush1.msra.mxu0 0.0
        %631 = vmatprep.subr.mxu0 0.0
        %632 = vmatpush1.msra.mxu0 0.0
        %633 = vmatprep.subr.mxu0 0.0
        %634 = vmatpush1.msra.mxu0 0.0
        %635 = vmatprep.subr.mxu0 0.0
        %636 = vmatpush1.msra.mxu0 0.0
        %637 = vmatprep.subr.mxu0 0.0
        %638 = vmatpush1.msra.mxu0 0.0
        %639 = vmatprep.mubr.f32.mxu0 0.0
        %640 = vmatmul.mubr.f32.gmra.mrb[0].mxu0 %v569
        %v641 = vpop.f32.mrb[0].mxu0
        %v642 = vadd.f32 0.0, %v641
        %v643 = vpop.f32.mrb[0].mxu0
        %v644 = vadd.f32 0.0, %v643
        %645 = vdwg.mxu0
        %v646 = vadd.f32 %v564, %v642
        %v647 = vadd.f32 %v565, %v644
        %648 = vrot.lane.b32.xlu0 %v193, 127
        %v649 = vpop.permute.xlu0 %648
        %650 = vrot.lane.b32.xlu0 %v195, 127
        %v651 = vpop.permute.xlu0 %650
        %vm652 = vcmp.lt.s32.totalorder %v171, 127
        %v653 = vsel %vm652, %v649, %v651
        %v654 = vsel %vm652, %v651, %v649
        %v655 = vsel %vm179, %v653, 0.0
        %v656 = vsel %vm180, %v654, 0.0
        %s657 = scalar_lea.vmem %s1, 40
        %v658 = vld [vmem:[%s657] sm:$0xff]
        %v660 = vsel %vm218, %v658, 0
        %v663 = vsel %vm222, %v655, 0
        %v666 = vsel %vm222, %v656, 0
        %668 = vmatprep.subr.mxu0 %v666
        %669 = vmatpush1.msra.mxu0 %v663
        %670 = vmatprep.subr.mxu0 0.0
        %671 = vmatpush1.msra.mxu0 0.0
        %672 = vmatprep.subr.mxu0 0.0
        %673 = vmatpush1.msra.mxu0 0.0
        %674 = vmatprep.subr.mxu0 0.0
        %675 = vmatpush1.msra.mxu0 0.0
        %676 = vmatprep.subr.mxu0 0.0
        %677 = vmatpush1.msra.mxu0 0.0
        %678 = vmatprep.subr.mxu0 0.0
        %679 = vmatpush1.msra.mxu0 0.0
        %680 = vmatprep.subr.mxu0 0.0
        %681 = vmatpush1.msra.mxu0 0.0
        %682 = vmatprep.subr.mxu0 0.0
        %683 = vmatpush1.msra.mxu0 0.0
        %684 = vmatprep.subr.mxu0 0.0
        %685 = vmatpush1.msra.mxu0 0.0
        %686 = vmatprep.subr.mxu0 0.0
        %687 = vmatpush1.msra.mxu0 0.0
        %688 = vmatprep.subr.mxu0 0.0
        %689 = vmatpush1.msra.mxu0 0.0
        %690 = vmatprep.subr.mxu0 0.0
        %691 = vmatpush1.msra.mxu0 0.0
        %692 = vmatprep.subr.mxu0 0.0
        %693 = vmatpush1.msra.mxu0 0.0
        %694 = vmatprep.subr.mxu0 0.0
        %695 = vmatpush1.msra.mxu0 0.0
        %696 = vmatprep.subr.mxu0 0.0
        %697 = vmatpush1.msra.mxu0 0.0
        %698 = vmatprep.subr.mxu0 0.0
        %699 = vmatpush1.msra.mxu0 0.0
        %700 = vmatprep.subr.mxu0 0.0
        %701 = vmatpush1.msra.mxu0 0.0
        %702 = vmatprep.subr.mxu0 0.0
        %703 = vmatpush1.msra.mxu0 0.0
        %704 = vmatprep.subr.mxu0 0.0
        %705 = vmatpush1.msra.mxu0 0.0
        %706 = vmatprep.subr.mxu0 0.0
        %707 = vmatpush1.msra.mxu0 0.0
        %708 = vmatprep.subr.mxu0 0.0
        %709 = vmatpush1.msra.mxu0 0.0
        %710 = vmatprep.subr.mxu0 0.0
        %711 = vmatpush1.msra.mxu0 0.0
        %712 = vmatprep.subr.mxu0 0.0
        %713 = vmatpush1.msra.mxu0 0.0
        %714 = vmatprep.subr.mxu0 0.0
        %715 = vmatpush1.msra.mxu0 0.0
        %716 = vmatprep.subr.mxu0 0.0
        %717 = vmatpush1.msra.mxu0 0.0
        %718 = vmatprep.subr.mxu0 0.0
        %719 = vmatpush1.msra.mxu0 0.0
        %720 = vmatprep.subr.mxu0 0.0
        %721 = vmatpush1.msra.mxu0 0.0
        %722 = vmatprep.subr.mxu0 0.0
        %723 = vmatpush1.msra.mxu0 0.0
        %724 = vmatprep.subr.mxu0 0.0
        %725 = vmatpush1.msra.mxu0 0.0
        %726 = vmatprep.subr.mxu0 0.0
        %727 = vmatpush1.msra.mxu0 0.0
        %728 = vmatprep.subr.mxu0 0.0
        %729 = vmatpush1.msra.mxu0 0.0
        %730 = vmatprep.subr.mxu0 0.0
        %731 = vmatpush1.msra.mxu0 0.0
        %732 = vmatprep.mubr.f32.mxu0 0.0
        %733 = vmatmul.mubr.f32.gmra.mrb[0].mxu0 %v660
        %v734 = vpop.f32.mrb[0].mxu0
        %v735 = vadd.f32 0.0, %v734
        %v736 = vpop.f32.mrb[0].mxu0
        %v737 = vadd.f32 0.0, %v736
        %738 = vdwg.mxu0
        %v739 = vadd.f32 %v646, %v735
        %v740 = vadd.f32 %v647, %v737
        %741 = vrot.lane.b32.xlu0 %v193, 113
        %v742 = vpop.permute.xlu0 %741
        %743 = vrot.lane.b32.xlu0 %v195, 113
        %v744 = vpop.permute.xlu0 %743
        %vm745 = vcmp.lt.s32.totalorder %v171, 113
        %v746 = vsel %vm745, %v742, %v744
        %v747 = vsel %vm745, %v744, %v742
        %v748 = vsel %vm189, %v746, 0.0
        %v749 = vsel %vm190, %v747, 0.0
        %s750 = scalar_lea.vmem %s1, 48
        %v751 = vld [vmem:[%s750] sm:$0xff]
        %v753 = vsel %vm218, %v751, 0
        %v756 = vsel %vm222, %v748, 0
        %v759 = vsel %vm222, %v749, 0
        %761 = vmatprep.subr.mxu0 %v759
        %762 = vmatpush1.msra.mxu0 %v756
        %763 = vmatprep.subr.mxu0 0.0
        %764 = vmatpush1.msra.mxu0 0.0
        %765 = vmatprep.subr.mxu0 0.0
        %766 = vmatpush1.msra.mxu0 0.0
        %767 = vmatprep.subr.mxu0 0.0
        %768 = vmatpush1.msra.mxu0 0.0
        %769 = vmatprep.subr.mxu0 0.0
        %770 = vmatpush1.msra.mxu0 0.0
        %771 = vmatprep.subr.mxu0 0.0
        %772 = vmatpush1.msra.mxu0 0.0
        %773 = vmatprep.subr.mxu0 0.0
        %774 = vmatpush1.msra.mxu0 0.0
        %775 = vmatprep.subr.mxu0 0.0
        %776 = vmatpush1.msra.mxu0 0.0
        %777 = vmatprep.subr.mxu0 0.0
        %778 = vmatpush1.msra.mxu0 0.0
        %779 = vmatprep.subr.mxu0 0.0
        %780 = vmatpush1.msra.mxu0 0.0
        %781 = vmatprep.subr.mxu0 0.0
        %782 = vmatpush1.msra.mxu0 0.0
        %783 = vmatprep.subr.mxu0 0.0
        %784 = vmatpush1.msra.mxu0 0.0
        %785 = vmatprep.subr.mxu0 0.0
        %786 = vmatpush1.msra.mxu0 0.0
        %787 = vmatprep.subr.mxu0 0.0
        %788 = vmatpush1.msra.mxu0 0.0
        %789 = vmatprep.subr.mxu0 0.0
        %790 = vmatpush1.msra.mxu0 0.0
        %791 = vmatprep.subr.mxu0 0.0
        %792 = vmatpush1.msra.mxu0 0.0
        %793 = vmatprep.subr.mxu0 0.0
        %794 = vmatpush1.msra.mxu0 0.0
        %795 = vmatprep.subr.mxu0 0.0
        %796 = vmatpush1.msra.mxu0 0.0
        %797 = vmatprep.subr.mxu0 0.0
        %798 = vmatpush1.msra.mxu0 0.0
        %799 = vmatprep.subr.mxu0 0.0
        %800 = vmatpush1.msra.mxu0 0.0
        %801 = vmatprep.subr.mxu0 0.0
        %802 = vmatpush1.msra.mxu0 0.0
        %803 = vmatprep.subr.mxu0 0.0
        %804 = vmatpush1.msra.mxu0 0.0
        %805 = vmatprep.subr.mxu0 0.0
        %806 = vmatpush1.msra.mxu0 0.0
        %807 = vmatprep.subr.mxu0 0.0
        %808 = vmatpush1.msra.mxu0 0.0
        %809 = vmatprep.subr.mxu0 0.0
        %810 = vmatpush1.msra.mxu0 0.0
        %811 = vmatprep.subr.mxu0 0.0
        %812 = vmatpush1.msra.mxu0 0.0
        %813 = vmatprep.subr.mxu0 0.0
        %814 = vmatpush1.msra.mxu0 0.0
        %815 = vmatprep.subr.mxu0 0.0
        %816 = vmatpush1.msra.mxu0 0.0
        %817 = vmatprep.subr.mxu0 0.0
        %818 = vmatpush1.msra.mxu0 0.0
        %819 = vmatprep.subr.mxu0 0.0
        %820 = vmatpush1.msra.mxu0 0.0
        %821 = vmatprep.subr.mxu0 0.0
        %822 = vmatpush1.msra.mxu0 0.0
        %823 = vmatprep.subr.mxu0 0.0
        %824 = vmatpush1.msra.mxu0 0.0
        %825 = vmatprep.mubr.f32.mxu0 0.0
        %826 = vmatmul.mubr.f32.gmra.mrb[0].mxu0 %v753
        %v827 = vpop.f32.mrb[0].mxu0
        %v828 = vadd.f32 0.0, %v827
        %v829 = vpop.f32.mrb[0].mxu0
        %v830 = vadd.f32 0.0, %v829
        %831 = vdwg.mxu0
        %v832 = vadd.f32 %v739, %v828
        %v833 = vadd.f32 %v740, %v830
        %834 = vrot.lane.b32.xlu0 %v193, 112
        %v835 = vpop.permute.xlu0 %834
        %836 = vrot.lane.b32.xlu0 %v195, 112
        %v837 = vpop.permute.xlu0 %836
        %vm838 = vcmp.lt.s32.totalorder %v171, 112
        %v839 = vsel %vm838, %v835, %v837
        %v840 = vsel %vm838, %v837, %v835
        %v841 = vsel %vm183, %v839, 0.0
        %v842 = vsel %vm184, %v840, 0.0
        %s843 = scalar_lea.vmem %s1, 56
        %v844 = vld [vmem:[%s843] sm:$0xff]
        %v846 = vsel %vm218, %v844, 0
        %v849 = vsel %vm222, %v841, 0
        %v852 = vsel %vm222, %v842, 0
        %854 = vmatprep.subr.mxu0 %v852
        %855 = vmatpush1.msra.mxu0 %v849
        %856 = vmatprep.subr.mxu0 0.0
        %857 = vmatpush1.msra.mxu0 0.0
        %858 = vmatprep.subr.mxu0 0.0
        %859 = vmatpush1.msra.mxu0 0.0
        %860 = vmatprep.subr.mxu0 0.0
        %861 = vmatpush1.msra.mxu0 0.0
        %862 = vmatprep.subr.mxu0 0.0
        %863 = vmatpush1.msra.mxu0 0.0
        %864 = vmatprep.subr.mxu0 0.0
        %865 = vmatpush1.msra.mxu0 0.0
        %866 = vmatprep.subr.mxu0 0.0
        %867 = vmatpush1.msra.mxu0 0.0
        %868 = vmatprep.subr.mxu0 0.0
        %869 = vmatpush1.msra.mxu0 0.0
        %870 = vmatprep.subr.mxu0 0.0
        %871 = vmatpush1.msra.mxu0 0.0
        %872 = vmatprep.subr.mxu0 0.0
        %873 = vmatpush1.msra.mxu0 0.0
        %874 = vmatprep.subr.mxu0 0.0
        %875 = vmatpush1.msra.mxu0 0.0
        %876 = vmatprep.subr.mxu0 0.0
        %877 = vmatpush1.msra.mxu0 0.0
        %878 = vmatprep.subr.mxu0 0.0
        %879 = vmatpush1.msra.mxu0 0.0
        %880 = vmatprep.subr.mxu0 0.0
        %881 = vmatpush1.msra.mxu0 0.0
        %882 = vmatprep.subr.mxu0 0.0
        %883 = vmatpush1.msra.mxu0 0.0
        %884 = vmatprep.subr.mxu0 0.0
        %885 = vmatpush1.msra.mxu0 0.0
        %886 = vmatprep.subr.mxu0 0.0
        %887 = vmatpush1.msra.mxu0 0.0
        %888 = vmatprep.subr.mxu0 0.0
        %889 = vmatpush1.msra.mxu0 0.0
        %890 = vmatprep.subr.mxu0 0.0
        %891 = vmatpush1.msra.mxu0 0.0
        %892 = vmatprep.subr.mxu0 0.0
        %893 = vmatpush1.msra.mxu0 0.0
        %894 = vmatprep.subr.mxu0 0.0
        %895 = vmatpush1.msra.mxu0 0.0
        %896 = vmatprep.subr.mxu0 0.0
        %897 = vmatpush1.msra.mxu0 0.0
        %898 = vmatprep.subr.mxu0 0.0
        %899 = vmatpush1.msra.mxu0 0.0
        %900 = vmatprep.subr.mxu0 0.0
        %901 = vmatpush1.msra.mxu0 0.0
        %902 = vmatprep.subr.mxu0 0.0
        %903 = vmatpush1.msra.mxu0 0.0
        %904 = vmatprep.subr.mxu0 0.0
        %905 = vmatpush1.msra.mxu0 0.0
        %906 = vmatprep.subr.mxu0 0.0
        %907 = vmatpush1.msra.mxu0 0.0
        %908 = vmatprep.subr.mxu0 0.0
        %909 = vmatpush1.msra.mxu0 0.0
        %910 = vmatprep.subr.mxu0 0.0
        %911 = vmatpush1.msra.mxu0 0.0
        %912 = vmatprep.subr.mxu0 0.0
        %913 = vmatpush1.msra.mxu0 0.0
        %914 = vmatprep.subr.mxu0 0.0
        %915 = vmatpush1.msra.mxu0 0.0
        %916 = vmatprep.subr.mxu0 0.0
        %917 = vmatpush1.msra.mxu0 0.0
        %918 = vmatprep.mubr.f32.mxu0 0.0
        %919 = vmatmul.mubr.f32.gmra.mrb[0].mxu0 %v846
        %v920 = vpop.f32.mrb[0].mxu0
        %v921 = vadd.f32 0.0, %v920
        %v922 = vpop.f32.mrb[0].mxu0
        %v923 = vadd.f32 0.0, %v922
        %924 = vdwg.mxu0
        %v925 = vadd.f32 %v832, %v921
        %v926 = vadd.f32 %v833, %v923
        %927 = vrot.lane.b32.xlu0 %v193, 111
        %v928 = vpop.permute.xlu0 %927
        %929 = vrot.lane.b32.xlu0 %v195, 111
        %v930 = vpop.permute.xlu0 %929
        %vm931 = vcmp.lt.s32.totalorder %v171, 111
        %v932 = vsel %vm931, %v928, %v930
        %v933 = vsel %vm931, %v930, %v928
        %v934 = vsel %vm191, %v932, 0.0
        %v935 = vsel %vm192, %v933, 0.0
        %s936 = scalar_lea.vmem %s1, 64
        %v937 = vld [vmem:[%s936] sm:$0xff]
        %v939 = vsel %vm218, %v937, 0
        %v942 = vsel %vm222, %v934, 0
        %v945 = vsel %vm222, %v935, 0
        %947 = vmatprep.subr.mxu0 %v945
        %948 = vmatpush1.msra.mxu0 %v942
        %949 = vmatprep.subr.mxu0 0.0
        %950 = vmatpush1.msra.mxu0 0.0
        %951 = vmatprep.subr.mxu0 0.0
        %952 = vmatpush1.msra.mxu0 0.0
        %953 = vmatprep.subr.mxu0 0.0
        %954 = vmatpush1.msra.mxu0 0.0
        %955 = vmatprep.subr.mxu0 0.0
        %956 = vmatpush1.msra.mxu0 0.0
        %957 = vmatprep.subr.mxu0 0.0
        %958 = vmatpush1.msra.mxu0 0.0
        %959 = vmatprep.subr.mxu0 0.0
        %960 = vmatpush1.msra.mxu0 0.0
        %961 = vmatprep.subr.mxu0 0.0
        %962 = vmatpush1.msra.mxu0 0.0
        %963 = vmatprep.subr.mxu0 0.0
        %964 = vmatpush1.msra.mxu0 0.0
        %965 = vmatprep.subr.mxu0 0.0
        %966 = vmatpush1.msra.mxu0 0.0
        %967 = vmatprep.subr.mxu0 0.0
        %968 = vmatpush1.msra.mxu0 0.0
        %969 = vmatprep.subr.mxu0 0.0
        %970 = vmatpush1.msra.mxu0 0.0
        %971 = vmatprep.subr.mxu0 0.0
        %972 = vmatpush1.msra.mxu0 0.0
        %973 = vmatprep.subr.mxu0 0.0
        %974 = vmatpush1.msra.mxu0 0.0
        %975 = vmatprep.subr.mxu0 0.0
        %976 = vmatpush1.msra.mxu0 0.0
        %977 = vmatprep.subr.mxu0 0.0
        %978 = vmatpush1.msra.mxu0 0.0
        %979 = vmatprep.subr.mxu0 0.0
        %980 = vmatpush1.msra.mxu0 0.0
        %981 = vmatprep.subr.mxu0 0.0
        %982 = vmatpush1.msra.mxu0 0.0
        %983 = vmatprep.subr.mxu0 0.0
        %984 = vmatpush1.msra.mxu0 0.0
        %985 = vmatprep.subr.mxu0 0.0
        %986 = vmatpush1.msra.mxu0 0.0
        %987 = vmatprep.subr.mxu0 0.0
        %988 = vmatpush1.msra.mxu0 0.0
        %989 = vmatprep.subr.mxu0 0.0
        %990 = vmatpush1.msra.mxu0 0.0
        %991 = vmatprep.subr.mxu0 0.0
        %992 = vmatpush1.msra.mxu0 0.0
        %993 = vmatprep.subr.mxu0 0.0
        %994 = vmatpush1.msra.mxu0 0.0
        %995 = vmatprep.subr.mxu0 0.0
        %996 = vmatpush1.msra.mxu0 0.0
        %997 = vmatprep.subr.mxu0 0.0
        %998 = vmatpush1.msra.mxu0 0.0
        %999 = vmatprep.subr.mxu0 0.0
        %1000 = vmatpush1.msra.mxu0 0.0
        %1001 = vmatprep.subr.mxu0 0.0
        %1002 = vmatpush1.msra.mxu0 0.0
        %1003 = vmatprep.subr.mxu0 0.0
        %1004 = vmatpush1.msra.mxu0 0.0
        %1005 = vmatprep.subr.mxu0 0.0
        %1006 = vmatpush1.msra.mxu0 0.0
        %1007 = vmatprep.subr.mxu0 0.0
        %1008 = vmatpush1.msra.mxu0 0.0
        %1009 = vmatprep.subr.mxu0 0.0
        %1010 = vmatpush1.msra.mxu0 0.0
        %1011 = vmatprep.mubr.f32.mxu0 0.0
        %1012 = vmatmul.mubr.f32.gmra.mrb[0].mxu0 %v939
        %v1013 = vpop.f32.mrb[0].mxu0
        %v1014 = vadd.f32 0.0, %v1013
        %v1015 = vpop.f32.mrb[0].mxu0
        %v1016 = vadd.f32 0.0, %v1015
        %1017 = vdwg.mxu0
        %v1018 = vadd.f32 %v925, %v1014
        %v1019 = vadd.f32 %v926, %v1016
        %1021 = vset.pattern.permute.xlu0 0
        %1022 = vperm.xlu0 %1021, %v169
        %v1023 = vpop.permute.xlu0 %1022
        %v1025 = vadd.f32 %v1018, %v1023
        %v1026 = vadd.f32 %v1019, %v1023
        %v1027 = vmax.f32 %v1025, 0.0
        %v1028 = vmax.f32 %v1026, 0.0
        %1029 = vst [vmem:[%s163] sm:$0xff] %v1027
        %1030 = vst [vmem:[%s163 + $0x8] sm:$0xff] %v1028
        %s1031 = sand.u32 %s93, 1
        %s1032 = scalar_lea.sflag [#allocation3], %s1031
        %s1033 = sand.u32 %s93, 1
        %s1034 = smul.addr %s1033, 16
        %s1035 = scalar_lea.vmem [#allocation2], %s1034
        // Predicated region
        $region33: #{tpu_custom_call.1} parent=31 // pred_check
          %p1036 = pneg %p103
        $region34: #{tpu_custom_call.1} parent=31 // pred_check_branch
          %1038 = sbr.rel (%p1036) target = $region36
        $region35: #{tpu_custom_call.1} parent=31 // pred_region
          %s1040 = ssub.s32 256, 256
          %1041 = vsyncadd %s1032, %s1040
          %s1042 = smul.addr %s17, 2
          %s1043 = smul.addr %s1042, 128
          %s1044 = scalar_lea.hbm %s3, %s1043
          %s1046 = sshll.u32 %s1035, 4
          %s1047 = int_to_ptr.vmem [resolvable:$true] %s1046
          %1049 = dma.vmem_to_hbm [thread:$0]  %s1047, 256, %s1044, %s1032
        $region36: #{tpu_custom_call.1} parent=31 // pred_fallthru
          _
      $region32: #{tpu_custom_call.1} parent=5 // pred_fallthru
        _
      %p1050 = scmp.le.s32.totalorder 2, %s12
      // Predicated region
      $region37: #{tpu_custom_call.1} parent=5 // pred_check
        %p1051 = pneg %p1050
      $region38: #{tpu_custom_call.1} parent=5 // pred_check_branch
        %1053 = sbr.rel (%p1051) target = $region40
      $region39: #{tpu_custom_call.1} parent=5 // pred_region
        %s1054 = ssub.s32 %s12, 2
        // Predicated region
        $region41: #{tpu_custom_call.1} parent=39 // pred_check
          %p1055 = pneg %p109
        $region42: #{tpu_custom_call.1} parent=39 // pred_check_branch
          %1057 = sbr.rel (%p1055) target = $region44
        $region43: #{tpu_custom_call.1} parent=39 // pred_region
          %s1058 = sand.u32 %s94, 1
          %s1059 = scalar_lea.sflag [#allocation3], %s1058
          %s1060 = sand.u32 %s94, 1
          %s1061 = smul.addr %s1060, 16
          %s1062 = scalar_lea.vmem [#allocation2], %s1061
          %1063 = dma.done %s1059, 256
        $region44: #{tpu_custom_call.1} parent=39 // pred_fallthru
          _
      $region40: #{tpu_custom_call.1} parent=5 // pred_fallthru
        _
    $region6: #{tpu_custom_call.1} parent=1 // loop_footer
      %s16 = sadd.s32 1, %s12
    $region7: #{tpu_custom_call.1} parent=1 // loop_footer_branch
      %11 = sbr.rel target = $region3
    $region8: #{tpu_custom_call.1} parent=1 // loop_exit
      _
    %1064 = vsyncpa [#allocation3], 1
    %s1065 = scalar_lea.sflag [#allocation3], 1
    %1066 = vsyncpa %s1065, 1

</llo_original>
